<compile_context>
chip_gen: v5e
topology: v5e:2x2
jax: 0.10.0
libtpu: 0.0.40
codegen_flags: <defaults>
</compile_context>

<pallas_src>
import jax
import jax.numpy as jnp
from jax import lax
from jax.experimental import pallas as pl
from jax.experimental.pallas import tpu as pltpu

VOCAB = 32       # vocab_size
EMB = 16         # embedding_dim
CTX = 2          # context_size
HID = 128        # linear1 hidden width (fixed to 128 in the module)
VPAD = 128       # vocab padded to a full 128-lane tile (lane-dense output)
NEG_BIG = -1e30  # bias for padding columns -> exp() underflows to exactly 0


def ngram_kernel(ids_ref, w1f_ref, b1_ref, w2t_ref, b2_ref, out_ref):
    # ids_ref : VMEM (TB, CTX) int32            token ids for this batch tile
    # w1f_ref : VMEM (CTX*VOCAB, HID) f32       folded (embedding @ linear1.weight.T)
    # b1_ref  : VMEM (1, HID) f32
    # w2t_ref : VMEM (HID, VPAD) f32            linear2.weight.T, zero-padded to VPAD
    # b2_ref  : VMEM (1, VPAD) f32              linear2.bias, NEG_BIG in padding cols
    # out_ref : VMEM (TB, VPAD) f32             log_probs (padding cols ~ NEG_BIG)
    tb = ids_ref.shape[0]
    ids = ids_ref[...]                                            # (TB, CTX) int32

    # Exact 0/1 one-hot "gather" over the CTX*VOCAB axis (also safe against
    # out-of-range ids: they select nothing).
    col = lax.broadcasted_iota(jnp.int32, (tb, CTX * VOCAB), 1)
    onehot = jnp.zeros((tb, CTX * VOCAB), jnp.float32)
    for c in range(CTX):                                          # CTX static & tiny
        onehot = onehot + (col == ids[:, c:c + 1] + c * VOCAB).astype(jnp.float32)

    # Fused embedding-lookup + linear1 (one MXU matmul), then ReLU.
    h = jnp.dot(onehot, w1f_ref[...],
                preferred_element_type=jnp.float32) + b1_ref[...]       # (TB, HID)
    h = jnp.maximum(h, 0.0)

    # linear2 on the lane-padded vocab axis.
    logits = jnp.dot(h, w2t_ref[...],
                     preferred_element_type=jnp.float32) + b2_ref[...]  # (TB, VPAD)

    # Numerically stable log_softmax over the (padded) vocab axis.  Padding
    # columns carry NEG_BIG bias -> exp underflows to 0 and never perturbs lse.
    m = jnp.max(logits, axis=-1, keepdims=True)
    lse = jnp.log(jnp.sum(jnp.exp(logits - m), axis=-1, keepdims=True)) + m
    out_ref[...] = logits - lse


def ngram_forward(ids, emb_table, w1, b1, w2, b2, *, tb=128):
    """Batched NGram forward.  ids: (B, CTX) int32 -> (B, VOCAB) f32 log-probs."""
    B = ids.shape[0]
    n_tiles = pl.cdiv(B, tb)
    Bp = n_tiles * tb
    if Bp != B:                               # pad batch to a tile multiple
        ids = jnp.pad(ids, ((0, Bp - B), (0, 0)))

    # ---- parameter prep (plain JAX, batch-independent, once per call) -------
    # Fold embedding table into linear1:
    #   w1fold[c*VOCAB + v, :] = emb_table[v] @ w1.T[c*EMB:(c+1)*EMB, :]
    # so that onehot @ w1fold == (gather + .view(B,-1)) @ w1.T exactly
    # (up to f32 reassociation).
    w1t = jnp.transpose(w1).reshape(CTX, EMB, HID)                # (CTX, EMB, HID)
    w1fold = jnp.einsum('ve,ceh->cvh', emb_table.astype(jnp.float32),
                        w1t).reshape(CTX * VOCAB, HID)            # (CTX*VOCAB, HID)
    b1_2d = b1.reshape(1, HID)
    w2t = jnp.zeros((HID, VPAD), jnp.float32).at[:, :VOCAB].set(jnp.transpose(w2))
    b2_2d = jnp.full((1, VPAD), NEG_BIG, jnp.float32).at[0, :VOCAB].set(b2)

    out = pl.pallas_call(
        ngram_kernel,
        out_shape=jax.ShapeDtypeStruct((Bp, VPAD), jnp.float32),
        grid_spec=pltpu.PrefetchScalarGridSpec(
            num_scalar_prefetch=0,
            grid=(n_tiles,),
            in_specs=[
                pl.BlockSpec((tb, CTX), lambda i: (i, 0)),                   # ids
                pl.BlockSpec((CTX * VOCAB, HID), lambda i: (0, 0)),          # folded W1
                pl.BlockSpec((1, HID), lambda i: (0, 0)),                    # b1
                pl.BlockSpec((HID, VPAD), lambda i: (0, 0)),                 # W2.T (padded)
                pl.BlockSpec((1, VPAD), lambda i: (0, 0)),                   # b2 (padded)
            ],
            out_specs=pl.BlockSpec((tb, VPAD), lambda i: (i, 0)),
        ),
        compiler_params=pltpu.CompilerParams(
            dimension_semantics=("parallel",)),
    )(ids, w1fold, b1_2d, w2t, b2_2d)

    return out[:B, :VOCAB]


if __name__ == "__main__":
    key = jax.random.PRNGKey(0)
    k_emb, k_w1, k_b1, k_w2, k_b2, k_ids = jax.random.split(key, 6)

    B = 200  # non-multiple of the 128-row tile: exercises padding + 2 grid steps

    # Deterministic synthetic parameters (shapes match nn.Module __init__).
    emb_table = jax.random.normal(k_emb, (VOCAB, EMB), jnp.float32)            # nn.Embedding
    lim1 = 1.0 / jnp.sqrt(CTX * EMB)
    w1 = jax.random.uniform(k_w1, (HID, CTX * EMB), jnp.float32, -lim1, lim1)  # linear1.weight
    b1 = jax.random.uniform(k_b1, (HID,), jnp.float32, -lim1, lim1)            # linear1.bias
    lim2 = 1.0 / jnp.sqrt(HID)
    w2 = jax.random.uniform(k_w2, (VOCAB, HID), jnp.float32, -lim2, lim2)      # linear2.weight
    b2 = jax.random.uniform(k_b2, (VOCAB,), jnp.float32, -lim2, lim2)          # linear2.bias

    # Batch of context token-id vectors (each row == the PyTorch `inputs`).
    ids = jax.random.randint(k_ids, (B, CTX), 0, VOCAB, jnp.int32)

    out = ngram_forward(ids, emb_table, w1, b1, w2, b2)
    out = jax.block_until_ready(out)

    # Pure-JAX reference == the PyTorch forward applied to every context row.
    embeds = emb_table[ids].reshape(B, CTX * EMB)
    h_ref = jnp.maximum(embeds @ w1.T + b1, 0.0)
    logits_ref = h_ref @ w2.T + b2
    ref = jax.nn.log_softmax(logits_ref, axis=1)

    assert out.shape == (B, VOCAB)
    assert jnp.allclose(out, ref, atol=1e-4, rtol=1e-4), "mismatch vs reference"
    print("KERNEL_OK")
</pallas_src>

<mosaic_0001>
module attributes {stable_mosaic.version = 11 : i64} {
  func.func @ngram_kernel(%arg0: i32, %arg1: memref<128x2xi32, #tpu.memory_space<vmem>>, %arg2: memref<64x128xf32, #tpu.memory_space<vmem>>, %arg3: memref<1x128xf32, #tpu.memory_space<vmem>>, %arg4: memref<128x128xf32, #tpu.memory_space<vmem>>, %arg5: memref<1x128xf32, #tpu.memory_space<vmem>>, %arg6: memref<128x128xf32, #tpu.memory_space<vmem>>) attributes {dimension_semantics = [#tpu.dimension_semantics<parallel>], iteration_bounds = array<i64: 2>, scalar_prefetch = 0 : i64, scratch_operands = 0 : i64, tpu.core_type = #tpu.core_type<tc>, window_params = [{transform_indices = @transform_0, window_bounds = array<i64: 128, 2>}, {pipeline_mode = #tpu.pipeline_mode<synchronous>, transform_indices = @transform_1, window_bounds = array<i64: 64, 128>}, {pipeline_mode = #tpu.pipeline_mode<synchronous>, transform_indices = @transform_2, window_bounds = array<i64: 1, 128>}, {pipeline_mode = #tpu.pipeline_mode<synchronous>, transform_indices = @transform_3, window_bounds = array<i64: 128, 128>}, {pipeline_mode = #tpu.pipeline_mode<synchronous>, transform_indices = @transform_4, window_bounds = array<i64: 1, 128>}, {transform_indices = @transform_5, window_bounds = array<i64: 128, 128>}]} {
    %c0 = arith.constant 0 : index
    %c0_0 = arith.constant 0 : index
    %0 = vector.load %arg1[%c0, %c0_0] : memref<128x2xi32, #tpu.memory_space<vmem>>, vector<128x2xi32>
    %1 = tpu.iota {dimensions = array<i32: 1>} : vector<128x64xi32>
    %cst = arith.constant 0.000000e+00 : f32
    %2 = vector.broadcast %cst : f32 to vector<128x64xf32>
    %3 = vector.extract_strided_slice %0 {offsets = [0, 0], sizes = [128, 1], strides = [1, 1]} : vector<128x2xi32> to vector<128x1xi32>
    %c0_i32 = arith.constant 0 : i32
    %4 = vector.broadcast %c0_i32 : i32 to vector<128x1xi32>
    %5 = arith.addi %3, %4 : vector<128x1xi32>
    %6 = vector.broadcast %5 : vector<128x1xi32> to vector<128x64xi32>
    %7 = arith.cmpi eq, %1, %6 : vector<128x64xi32>
    %8 = arith.extui %7 : vector<128x64xi1> to vector<128x64xi32>
    %9 = arith.sitofp %8 : vector<128x64xi32> to vector<128x64xf32>
    %10 = arith.addf %2, %9 : vector<128x64xf32>
    %11 = vector.extract_strided_slice %0 {offsets = [0, 1], sizes = [128, 1], strides = [1, 1]} : vector<128x2xi32> to vector<128x1xi32>
    %c32_i32 = arith.constant 32 : i32
    %12 = vector.broadcast %c32_i32 : i32 to vector<128x1xi32>
    %13 = arith.addi %11, %12 : vector<128x1xi32>
    %14 = vector.broadcast %13 : vector<128x1xi32> to vector<128x64xi32>
    %15 = arith.cmpi eq, %1, %14 : vector<128x64xi32>
    %16 = arith.extui %15 : vector<128x64xi1> to vector<128x64xi32>
    %17 = arith.sitofp %16 : vector<128x64xi32> to vector<128x64xf32>
    %18 = arith.addf %10, %17 : vector<128x64xf32>
    %c0_1 = arith.constant 0 : index
    %c0_2 = arith.constant 0 : index
    %19 = vector.load %arg2[%c0_1, %c0_2] : memref<64x128xf32, #tpu.memory_space<vmem>>, vector<64x128xf32>
    %cst_3 = arith.constant dense<0.000000e+00> : vector<128x128xf32>
    %20 = tpu.matmul %18, %19, %cst_3 {dimension_numbers = #tpu.dot_dimension_numbers<[1], [0], [0], [1], [0, 0, 1, 1], [], []>} : vector<128x64xf32>, vector<64x128xf32>, vector<128x128xf32> -> vector<128x128xf32>
    %c0_4 = arith.constant 0 : index
    %c0_5 = arith.constant 0 : index
    %21 = vector.load %arg3[%c0_4, %c0_5] : memref<1x128xf32, #tpu.memory_space<vmem>>, vector<1x128xf32>
    %22 = vector.broadcast %21 : vector<1x128xf32> to vector<128x128xf32>
    %23 = arith.addf %20, %22 : vector<128x128xf32>
    %cst_6 = arith.constant 0.000000e+00 : f32
    %24 = vector.broadcast %cst_6 : f32 to vector<128x128xf32>
    %25 = arith.maximumf %23, %24 : vector<128x128xf32>
    %c0_7 = arith.constant 0 : index
    %c0_8 = arith.constant 0 : index
    %26 = vector.load %arg4[%c0_7, %c0_8] : memref<128x128xf32, #tpu.memory_space<vmem>>, vector<128x128xf32>
    %cst_9 = arith.constant dense<0.000000e+00> : vector<128x128xf32>
    %27 = tpu.matmul %25, %26, %cst_9 {dimension_numbers = #tpu.dot_dimension_numbers<[1], [0], [0], [1], [0, 0, 1, 1], [], []>} : vector<128x128xf32>, vector<128x128xf32>, vector<128x128xf32> -> vector<128x128xf32>
    %c0_10 = arith.constant 0 : index
    %c0_11 = arith.constant 0 : index
    %28 = vector.load %arg5[%c0_10, %c0_11] : memref<1x128xf32, #tpu.memory_space<vmem>>, vector<1x128xf32>
    %29 = vector.broadcast %28 : vector<1x128xf32> to vector<128x128xf32>
    %30 = arith.addf %27, %29 : vector<128x128xf32>
    %cst_12 = arith.constant dense<0xFF800000> : vector<128xf32>
    %31 = vector.multi_reduction <maximumf>, %30, %cst_12 [1] : vector<128x128xf32> to vector<128xf32>
    %32 = vector.shape_cast %31 : vector<128xf32> to vector<128x1xf32>
    %33 = vector.broadcast %32 : vector<128x1xf32> to vector<128x128xf32>
    %34 = arith.subf %30, %33 : vector<128x128xf32>
    %35 = math.exp %34 : vector<128x128xf32>
    %cst_13 = arith.constant dense<0.000000e+00> : vector<128xf32>
    %36 = vector.multi_reduction <add>, %35, %cst_13 [1] : vector<128x128xf32> to vector<128xf32>
    %37 = vector.shape_cast %36 : vector<128xf32> to vector<128x1xf32>
    %38 = math.log %37 : vector<128x1xf32>
    %39 = arith.addf %38, %32 : vector<128x1xf32>
    %40 = vector.broadcast %39 : vector<128x1xf32> to vector<128x128xf32>
    %41 = arith.subf %30, %40 : vector<128x128xf32>
    %c0_14 = arith.constant 0 : index
    %c0_15 = arith.constant 0 : index
    %42 = vector.load %arg6[%c0_14, %c0_15] : memref<128x128xf32, #tpu.memory_space<vmem>>, vector<128x128xf32>
    tpu.vector_store %arg6[%c0_14, %c0_15], %41 {strides = array<i32>} : memref<128x128xf32, #tpu.memory_space<vmem>>, vector<128x128xf32>,
    return
  }
  func.func @transform_0(%arg0: i32) -> (i32, i32) {
    %c0_i32 = arith.constant 0 : i32
    %c0_i32_0 = arith.constant 0 : i32
    return %arg0, %c0_i32 : i32, i32
  }
  func.func @transform_1(%arg0: i32) -> (i32, i32) {
    %c0_i32 = arith.constant 0 : i32
    %c0_i32_0 = arith.constant 0 : i32
    %c0_i32_1 = arith.constant 0 : i32
    return %c0_i32, %c0_i32_0 : i32, i32
  }
  func.func @transform_2(%arg0: i32) -> (i32, i32) {
    %c0_i32 = arith.constant 0 : i32
    %c0_i32_0 = arith.constant 0 : i32
    %c0_i32_1 = arith.constant 0 : i32
    return %c0_i32, %c0_i32_0 : i32, i32
  }
  func.func @transform_3(%arg0: i32) -> (i32, i32) {
    %c0_i32 = arith.constant 0 : i32
    %c0_i32_0 = arith.constant 0 : i32
    %c0_i32_1 = arith.constant 0 : i32
    return %c0_i32, %c0_i32_0 : i32, i32
  }
  func.func @transform_4(%arg0: i32) -> (i32, i32) {
    %c0_i32 = arith.constant 0 : i32
    %c0_i32_0 = arith.constant 0 : i32
    %c0_i32_1 = arith.constant 0 : i32
    return %c0_i32, %c0_i32_0 : i32, i32
  }
  func.func @transform_5(%arg0: i32) -> (i32, i32) {
    %c0_i32 = arith.constant 0 : i32
    %c0_i32_0 = arith.constant 0 : i32
    return %arg0, %c0_i32 : i32, i32
  }
}

</mosaic_0001>

<llo_original>
// kernel: tpu_custom_call.1
$region0: #{tpu_custom_call.1}
  #allocation0 [shape = 'u32[]', space=smem, size = 0x4, offset = 0x4, fixed_abs, tag = 'smem constant byte address 0x4 - core index']
  #allocation1 [shape = 'u32[72,128]{1,0:T(1,128)}', space=vmem, size = 0x9000, scoped, tag = 'internal scratch']
  %s0 = inlined_call_operand.vmem [shape: s32[256,2], index: 0, kind: input, shape index: {}]
  %s1 = inlined_call_operand.vmem [shape: f32[64,128], index: 1, kind: input, shape index: {}]
  %s2 = inlined_call_operand.vmem [shape: f32[1,128], index: 2, kind: input, shape index: {}]
  %s3 = inlined_call_operand.vmem [shape: f32[128,128], index: 3, kind: input, shape index: {}]
  %s4 = inlined_call_operand.vmem [shape: f32[1,128], index: 4, kind: input, shape index: {}]
  %s5 = inlined_call_operand.hbm [shape: f32[256,128], index: 5, kind: output, shape index: {}]
  %s6 = sld [smem:[#allocation0]]
  $region53: #{tpu_custom_call.1} parent=0
    _
  %s8 = ssub.s32 1, %s6
  %s9 = scalar_select 0, %s8, %s6
  $region1: #{tpu_custom_call.1} parent=0
    #allocation2 [shape = 'u8[131072]{0}', space=vmem, size = 0x20000, scoped, tag = 'output window, operand 0']
    #allocation3 [shape = 's32[2]{0}', space=sflag, size = 0x8, scoped, tag = 'scoped memory for tpu_custom_call.1']
    %10 = vsyncpa [#allocation3], 0
    %s11 = scalar_lea.sflag [#allocation3], 1
    %12 = vsyncpa %s11, 0
    loop: start=0, step=1, limit=4
    $region2: #{tpu_custom_call.1} parent=1 // loop_pre_header
      _
    $region3: #{tpu_custom_call.1} parent=1 // loop_header
      %s14 = sphi 0, %s18
      %p15 = scmp.ge.s32.totalorder %s14, 4
      %s24 = sphi 0, %s26
      %s27 = sphi 0, %s24
      %s28 = sphi 0, %s27
      %s44 = sphi 0, %s28
      %s48 = sphi 0, %s48
      %s50 = sphi 0, %s48
      %s51 = sphi 0, %s50
      %s65 = sphi 0, %s51
      %s69 = sphi 0, %s69
      %s71 = sphi 0, %s69
      %s72 = sphi 0, %s71
      %s86 = sphi 0, %s72
      %s90 = sphi 0, %s90
      %s92 = sphi 0, %s90
      %s93 = sphi 0, %s92
      %s107 = sphi 0, %s93
      %s111 = sphi 0, %s111
      %s113 = sphi 0, %s111
      %s114 = sphi 0, %s113
      %s128 = sphi 0, %s114
      %s134 = sphi 0, %s136
      %s137 = sphi 0, %s134
      %s138 = sphi 0, %s137
      %s154 = sphi 0, %s138
    $region4: #{tpu_custom_call.1} parent=1 // loop_header_branch
      %17 = sbr.rel (%p15) target = $region8
    $region5: #{tpu_custom_call.1} parent=1 // loop_body
      %s19 = ssub.s32 %s14, 1
      %s20 = ssub.s32 %s14, 2
      %s21 = sadd.s32 %s14, 1
      %s22 = ssub.s32 %s14, %s21
      %p23 = scmp.eq.s32.totalorder %s22, 0
      %s25 = sadd.s32 %s24, 1
      %s26 = scalar_select %p23, %s24, %s25
      %p29 = pneg %p23
      %p30 = scmp.eq.s32.totalorder %s14, 1
      %p31 = por %p29, %p30
      %p32 = scmp.ne.s32.totalorder %s24, %s27
      %p33 = scmp.eq.s32.totalorder %s14, 0
      %p34 = por %p32, %p33
      %p35 = scmp.ne.s32.totalorder %s24, %s27
      %p36 = scmp.eq.s32.totalorder %s19, 1
      %p37 = por %p35, %p36
      %p38 = scmp.ne.s32.totalorder %s27, %s28
      %p39 = scmp.eq.s32.totalorder %s19, 0
      %p40 = por %p38, %p39
      %p41 = scmp.ne.s32.totalorder %s27, %s28
      %p42 = scmp.eq.s32.totalorder %s20, 1
      %p43 = por %p41, %p42
      %p45 = scmp.ne.s32.totalorder %s28, %s44
      %p46 = scmp.eq.s32.totalorder %s20, 0
      %p47 = por %p45, %p46
      %s49 = sadd.s32 %s48, 1
      %p52 = scmp.eq.s32.totalorder %s14, 1
      %p53 = scmp.ne.s32.totalorder %s48, %s50
      %p54 = scmp.eq.s32.totalorder %s14, 0
      %p55 = por %p53, %p54
      %p56 = scmp.ne.s32.totalorder %s48, %s50
      %p57 = scmp.eq.s32.totalorder %s19, 1
      %p58 = por %p56, %p57
      %p59 = scmp.ne.s32.totalorder %s50, %s51
      %p60 = scmp.eq.s32.totalorder %s19, 0
      %p61 = por %p59, %p60
      %p62 = scmp.ne.s32.totalorder %s50, %s51
      %p63 = scmp.eq.s32.totalorder %s20, 1
      %p64 = por %p62, %p63
      %p66 = scmp.ne.s32.totalorder %s51, %s65
      %p67 = scmp.eq.s32.totalorder %s20, 0
      %p68 = por %p66, %p67
      %s70 = sadd.s32 %s69, 1
      %p73 = scmp.eq.s32.totalorder %s14, 1
      %p74 = scmp.ne.s32.totalorder %s69, %s71
      %p75 = scmp.eq.s32.totalorder %s14, 0
      %p76 = por %p74, %p75
      %p77 = scmp.ne.s32.totalorder %s69, %s71
      %p78 = scmp.eq.s32.totalorder %s19, 1
      %p79 = por %p77, %p78
      %p80 = scmp.ne.s32.totalorder %s71, %s72
      %p81 = scmp.eq.s32.totalorder %s19, 0
      %p82 = por %p80, %p81
      %p83 = scmp.ne.s32.totalorder %s71, %s72
      %p84 = scmp.eq.s32.totalorder %s20, 1
      %p85 = por %p83, %p84
      %p87 = scmp.ne.s32.totalorder %s72, %s86
      %p88 = scmp.eq.s32.totalorder %s20, 0
      %p89 = por %p87, %p88
      %s91 = sadd.s32 %s90, 1
      %p94 = scmp.eq.s32.totalorder %s14, 1
      %p95 = scmp.ne.s32.totalorder %s90, %s92
      %p96 = scmp.eq.s32.totalorder %s14, 0
      %p97 = por %p95, %p96
      %p98 = scmp.ne.s32.totalorder %s90, %s92
      %p99 = scmp.eq.s32.totalorder %s19, 1
      %p100 = por %p98, %p99
      %p101 = scmp.ne.s32.totalorder %s92, %s93
      %p102 = scmp.eq.s32.totalorder %s19, 0
      %p103 = por %p101, %p102
      %p104 = scmp.ne.s32.totalorder %s92, %s93
      %p105 = scmp.eq.s32.totalorder %s20, 1
      %p106 = por %p104, %p105
      %p108 = scmp.ne.s32.totalorder %s93, %s107
      %p109 = scmp.eq.s32.totalorder %s20, 0
      %p110 = por %p108, %p109
      %s112 = sadd.s32 %s111, 1
      %p115 = scmp.eq.s32.totalorder %s14, 1
      %p116 = scmp.ne.s32.totalorder %s111, %s113
      %p117 = scmp.eq.s32.totalorder %s14, 0
      %p118 = por %p116, %p117
      %p119 = scmp.ne.s32.totalorder %s111, %s113
      %p120 = scmp.eq.s32.totalorder %s19, 1
      %p121 = por %p119, %p120
      %p122 = scmp.ne.s32.totalorder %s113, %s114
      %p123 = scmp.eq.s32.totalorder %s19, 0
      %p124 = por %p122, %p123
      %p125 = scmp.ne.s32.totalorder %s113, %s114
      %p126 = scmp.eq.s32.totalorder %s20, 1
      %p127 = por %p125, %p126
      %p129 = scmp.ne.s32.totalorder %s114, %s128
      %p130 = scmp.eq.s32.totalorder %s20, 0
      %p131 = por %p129, %p130
      %s132 = ssub.s32 %s14, %s21
      %p133 = scmp.eq.s32.totalorder %s132, 0
      %s135 = sadd.s32 %s134, 1
      %s136 = scalar_select %p133, %s134, %s135
      %p139 = pneg %p133
      %p140 = scmp.eq.s32.totalorder %s14, 1
      %p141 = por %p139, %p140
      %p142 = scmp.ne.s32.totalorder %s134, %s137
      %p143 = scmp.eq.s32.totalorder %s14, 0
      %p144 = por %p142, %p143
      %p145 = scmp.ne.s32.totalorder %s134, %s137
      %p146 = scmp.eq.s32.totalorder %s19, 1
      %p147 = por %p145, %p146
      %p148 = scmp.ne.s32.totalorder %s137, %s138
      %p149 = scmp.eq.s32.totalorder %s19, 0
      %p150 = por %p148, %p149
      %p151 = scmp.ne.s32.totalorder %s137, %s138
      %p152 = scmp.eq.s32.totalorder %s20, 1
      %p153 = por %p151, %p152
      %p155 = scmp.ne.s32.totalorder %s138, %s154
      %p156 = scmp.eq.s32.totalorder %s20, 0
      %p157 = por %p155, %p156
      %p158 = scmp.le.s32.totalorder 1, %s14
      %p159 = scmp.lt.s32.totalorder %s14, 3
      %p160 = pnand %p158, %p159
      %p161 = pneg %p160
      // Predicated region
      $region9: #{tpu_custom_call.1} parent=5 // pred_check
        _
      $region10: #{tpu_custom_call.1} parent=5 // pred_check_branch
        %163 = sbr.rel (%p160) target = $region12
      $region11: #{tpu_custom_call.1} parent=5 // pred_region
        %s164 = ssub.s32 %s14, 1
        // Predicated region
        $region13: #{tpu_custom_call.1} parent=11 // pred_check
          %p165 = pneg %p61
        $region14: #{tpu_custom_call.1} parent=11 // pred_check_branch
          %167 = sbr.rel (%p165) target = $region16
        $region15: #{tpu_custom_call.1} parent=11 // pred_region
          _
        $region16: #{tpu_custom_call.1} parent=11 // pred_fallthru
          _
        // Predicated region
        $region17: #{tpu_custom_call.1} parent=11 // pred_check
          %p168 = pneg %p82
        $region18: #{tpu_custom_call.1} parent=11 // pred_check_branch
          %170 = sbr.rel (%p168) target = $region20
        $region19: #{tpu_custom_call.1} parent=11 // pred_region
          _
        $region20: #{tpu_custom_call.1} parent=11 // pred_fallthru
          _
        // Predicated region
        $region21: #{tpu_custom_call.1} parent=11 // pred_check
          %p171 = pneg %p103
        $region22: #{tpu_custom_call.1} parent=11 // pred_check_branch
          %173 = sbr.rel (%p171) target = $region24
        $region23: #{tpu_custom_call.1} parent=11 // pred_region
          _
        $region24: #{tpu_custom_call.1} parent=11 // pred_fallthru
          _
        // Predicated region
        $region25: #{tpu_custom_call.1} parent=11 // pred_check
          %p174 = pneg %p124
        $region26: #{tpu_custom_call.1} parent=11 // pred_check_branch
          %176 = sbr.rel (%p174) target = $region28
        $region27: #{tpu_custom_call.1} parent=11 // pred_region
          _
        $region28: #{tpu_custom_call.1} parent=11 // pred_fallthru
          _
      $region12: #{tpu_custom_call.1} parent=5 // pred_fallthru
        _
      %p177 = scmp.lt.s32.totalorder %s14, 2
      // Predicated region
      $region29: #{tpu_custom_call.1} parent=5 // pred_check
        %p178 = pneg %p177
      $region30: #{tpu_custom_call.1} parent=5 // pred_check_branch
        %180 = sbr.rel (%p178) target = $region32
      $region31: #{tpu_custom_call.1} parent=5 // pred_region
        // Predicated region
        $region33: #{tpu_custom_call.1} parent=31 // pred_check
          %p181 = pneg %p34
        $region34: #{tpu_custom_call.1} parent=31 // pred_check_branch
          %183 = sbr.rel (%p181) target = $region36
        $region35: #{tpu_custom_call.1} parent=31 // pred_region
          %s184 = smul.u32 16, %s14
          %p185 = scmp.lt.s32.totalorder %s184, 31
          %s186 = scalar_select %p185, %s184, 31
          %s187 = smul.addr %s186, 8
          %s188 = scalar_lea.vmem %s0, %s187
          %s189 = smul.u32 16, %s14
        $region36: #{tpu_custom_call.1} parent=31 // pred_fallthru
          _
      $region32: #{tpu_custom_call.1} parent=5 // pred_fallthru
        _
      %p190 = scmp.le.s32.totalorder 1, %s14
      %p191 = scmp.lt.s32.totalorder %s14, 3
      %p192 = pnand %p190, %p191
      %p193 = pneg %p192
      // Predicated region
      $region37: #{tpu_custom_call.1} parent=5 // pred_check
        _
      $region38: #{tpu_custom_call.1} parent=5 // pred_check_branch
        %195 = sbr.rel (%p192) target = $region40
      $region39: #{tpu_custom_call.1} parent=5 // pred_region
        %s196 = ssub.s32 %s14, 1
        %s197 = smul.u32 16, %s19
        %p198 = scmp.lt.s32.totalorder %s197, 31
        %s199 = scalar_select %p198, %s197, 31
        %s200 = smul.addr %s199, 8
        %s201 = scalar_lea.vmem %s0, %s200
        %p202 = pneg %p40
        %p203 = pneg %p37
        %p204 = pneg %p61
        %p205 = pneg %p58
        %p206 = pneg %p82
        %p207 = pneg %p79
        %p208 = pneg %p103
        %p209 = pneg %p100
        %p210 = pneg %p124
        %p211 = pneg %p121
        %p212 = pneg %p150
        %p213 = pneg %p147
        %s214 = sand.u32 %s137, 1
        %s215 = scalar_lea.sflag [#allocation3], %s214
        %s216 = sand.u32 %s137, 1
        %s217 = smul.addr %s216, 128
        %s218 = scalar_lea.vmem [#allocation2], %s217
        %s219 = smul.u32 16, %s19
        %p220 = scmp.lt.s32.totalorder %s219, 31
        %s221 = scalar_select %p220, %s219, 31
        %s222 = smul.addr %s221, 8
        %s223 = scalar_lea.vmem %s0, %s222
        %s224 = smul.u32 16, %s19
        %s225 = smul.u32 16, %s19
        %v226 = vld [vmem:[%s223] sm:$0xff]
        %v227 = vld [vmem:[%s223 + $0x8] sm:$0xff]
        %v228 = vld [vmem:[%s223 + $0x10] sm:$0xff]
        %v229 = vld [vmem:[%s223 + $0x18] sm:$0xff]
        %v230 = vld [vmem:[%s223 + $0x20] sm:$0xff]
        %v231 = vld [vmem:[%s223 + $0x28] sm:$0xff]
        %v232 = vld [vmem:[%s223 + $0x30] sm:$0xff]
        %v233 = vld [vmem:[%s223 + $0x38] sm:$0xff]
        %v234 = vld [vmem:[%s223 + $0x40] sm:$0xff]
        %v235 = vld [vmem:[%s223 + $0x48] sm:$0xff]
        %v236 = vld [vmem:[%s223 + $0x50] sm:$0xff]
        %v237 = vld [vmem:[%s223 + $0x58] sm:$0xff]
        %v238 = vld [vmem:[%s223 + $0x60] sm:$0xff]
        %v239 = vld [vmem:[%s223 + $0x68] sm:$0xff]
        %v240 = vld [vmem:[%s223 + $0x70] sm:$0xff]
        %v241 = vld [vmem:[%s223 + $0x78] sm:$0xff]
        %v242 = vlaneseq
        %v243 = vand.u32 %v242, 127
        %244 = vset.pattern.permute.xlu0 0
        %245 = vperm.xlu0 %244, %v226
        %v246 = vpop.permute.xlu0 %245
        %247 = vset.pattern.permute.xlu0 0
        %248 = vperm.xlu0 %247, %v227
        %v249 = vpop.permute.xlu0 %248
        %250 = vset.pattern.permute.xlu0 0
        %251 = vperm.xlu0 %250, %v228
        %v252 = vpop.permute.xlu0 %251
        %253 = vset.pattern.permute.xlu0 0
        %254 = vperm.xlu0 %253, %v229
        %v255 = vpop.permute.xlu0 %254
        %256 = vset.pattern.permute.xlu0 0
        %257 = vperm.xlu0 %256, %v230
        %v258 = vpop.permute.xlu0 %257
        %259 = vset.pattern.permute.xlu0 0
        %260 = vperm.xlu0 %259, %v231
        %v261 = vpop.permute.xlu0 %260
        %262 = vset.pattern.permute.xlu0 0
        %263 = vperm.xlu0 %262, %v232
        %v264 = vpop.permute.xlu0 %263
        %265 = vset.pattern.permute.xlu0 0
        %266 = vperm.xlu0 %265, %v233
        %v267 = vpop.permute.xlu0 %266
        %268 = vset.pattern.permute.xlu0 0
        %269 = vperm.xlu0 %268, %v234
        %v270 = vpop.permute.xlu0 %269
        %271 = vset.pattern.permute.xlu0 0
        %272 = vperm.xlu0 %271, %v235
        %v273 = vpop.permute.xlu0 %272
        %274 = vset.pattern.permute.xlu0 0
        %275 = vperm.xlu0 %274, %v236
        %v276 = vpop.permute.xlu0 %275
        %277 = vset.pattern.permute.xlu0 0
        %278 = vperm.xlu0 %277, %v237
        %v279 = vpop.permute.xlu0 %278
        %280 = vset.pattern.permute.xlu0 0
        %281 = vperm.xlu0 %280, %v238
        %v282 = vpop.permute.xlu0 %281
        %283 = vset.pattern.permute.xlu0 0
        %284 = vperm.xlu0 %283, %v239
        %v285 = vpop.permute.xlu0 %284
        %286 = vset.pattern.permute.xlu0 0
        %287 = vperm.xlu0 %286, %v240
        %v288 = vpop.permute.xlu0 %287
        %289 = vset.pattern.permute.xlu0 0
        %290 = vperm.xlu0 %289, %v241
        %v291 = vpop.permute.xlu0 %290
        %vm292 = vcmp.eq.s32.totalorder %v243, %v246
        %vm293 = vcmp.eq.s32.totalorder %v243, %v249
        %vm294 = vcmp.eq.s32.totalorder %v243, %v252
        %vm295 = vcmp.eq.s32.totalorder %v243, %v255
        %vm296 = vcmp.eq.s32.totalorder %v243, %v258
        %vm297 = vcmp.eq.s32.totalorder %v243, %v261
        %vm298 = vcmp.eq.s32.totalorder %v243, %v264
        %vm299 = vcmp.eq.s32.totalorder %v243, %v267
        %vm300 = vcmp.eq.s32.totalorder %v243, %v270
        %vm301 = vcmp.eq.s32.totalorder %v243, %v273
        %vm302 = vcmp.eq.s32.totalorder %v243, %v276
        %vm303 = vcmp.eq.s32.totalorder %v243, %v279
        %vm304 = vcmp.eq.s32.totalorder %v243, %v282
        %vm305 = vcmp.eq.s32.totalorder %v243, %v285
        %vm306 = vcmp.eq.s32.totalorder %v243, %v288
        %vm307 = vcmp.eq.s32.totalorder %v243, %v291
        %v308 = vsel %vm292, 1, 0
        %v309 = vsel %vm293, 1, 0
        %v310 = vsel %vm294, 1, 0
        %v311 = vsel %vm295, 1, 0
        %v312 = vsel %vm296, 1, 0
        %v313 = vsel %vm297, 1, 0
        %v314 = vsel %vm298, 1, 0
        %v315 = vsel %vm299, 1, 0
        %v316 = vsel %vm300, 1, 0
        %v317 = vsel %vm301, 1, 0
        %v318 = vsel %vm302, 1, 0
        %v319 = vsel %vm303, 1, 0
        %v320 = vsel %vm304, 1, 0
        %v321 = vsel %vm305, 1, 0
        %v322 = vsel %vm306, 1, 0
        %v323 = vsel %vm307, 1, 0
        %v324 = vcvt.s32.f32 %v308
        %v325 = vcvt.s32.f32 %v309
        %v326 = vcvt.s32.f32 %v310
        %v327 = vcvt.s32.f32 %v311
        %v328 = vcvt.s32.f32 %v312
        %v329 = vcvt.s32.f32 %v313
        %v330 = vcvt.s32.f32 %v314
        %v331 = vcvt.s32.f32 %v315
        %v332 = vcvt.s32.f32 %v316
        %v333 = vcvt.s32.f32 %v317
        %v334 = vcvt.s32.f32 %v318
        %v335 = vcvt.s32.f32 %v319
        %v336 = vcvt.s32.f32 %v320
        %v337 = vcvt.s32.f32 %v321
        %v338 = vcvt.s32.f32 %v322
        %v339 = vcvt.s32.f32 %v323
        %v340 = vadd.f32 %v324, 0.0
        %v341 = vadd.f32 %v325, 0.0
        %v342 = vadd.f32 %v326, 0.0
        %v343 = vadd.f32 %v327, 0.0
        %v344 = vadd.f32 %v328, 0.0
        %v345 = vadd.f32 %v329, 0.0
        %v346 = vadd.f32 %v330, 0.0
        %v347 = vadd.f32 %v331, 0.0
        %v348 = vadd.f32 %v332, 0.0
        %v349 = vadd.f32 %v333, 0.0
        %v350 = vadd.f32 %v334, 0.0
        %v351 = vadd.f32 %v335, 0.0
        %v352 = vadd.f32 %v336, 0.0
        %v353 = vadd.f32 %v337, 0.0
        %v354 = vadd.f32 %v338, 0.0
        %v355 = vadd.f32 %v339, 0.0
        %v356 = vadd.s32 %v226, 32
        %v357 = vadd.s32 %v227, 32
        %v358 = vadd.s32 %v228, 32
        %v359 = vadd.s32 %v229, 32
        %v360 = vadd.s32 %v230, 32
        %v361 = vadd.s32 %v231, 32
        %v362 = vadd.s32 %v232, 32
        %v363 = vadd.s32 %v233, 32
        %v364 = vadd.s32 %v234, 32
        %v365 = vadd.s32 %v235, 32
        %v366 = vadd.s32 %v236, 32
        %v367 = vadd.s32 %v237, 32
        %v368 = vadd.s32 %v238, 32
        %v369 = vadd.s32 %v239, 32
        %v370 = vadd.s32 %v240, 32
        %v371 = vadd.s32 %v241, 32
        %372 = vset.pattern.permute.xlu0 1
        %373 = vperm.xlu0 %372, %v356
        %v374 = vpop.permute.xlu0 %373
        %375 = vset.pattern.permute.xlu0 1
        %376 = vperm.xlu0 %375, %v357
        %v377 = vpop.permute.xlu0 %376
        %378 = vset.pattern.permute.xlu0 1
        %379 = vperm.xlu0 %378, %v358
        %v380 = vpop.permute.xlu0 %379
        %381 = vset.pattern.permute.xlu0 1
        %382 = vperm.xlu0 %381, %v359
        %v383 = vpop.permute.xlu0 %382
        %384 = vset.pattern.permute.xlu0 1
        %385 = vperm.xlu0 %384, %v360
        %v386 = vpop.permute.xlu0 %385
        %387 = vset.pattern.permute.xlu0 1
        %388 = vperm.xlu0 %387, %v361
        %v389 = vpop.permute.xlu0 %388
        %390 = vset.pattern.permute.xlu0 1
        %391 = vperm.xlu0 %390, %v362
        %v392 = vpop.permute.xlu0 %391
        %393 = vset.pattern.permute.xlu0 1
        %394 = vperm.xlu0 %393, %v363
        %v395 = vpop.permute.xlu0 %394
        %396 = vset.pattern.permute.xlu0 1
        %397 = vperm.xlu0 %396, %v364
        %v398 = vpop.permute.xlu0 %397
        %399 = vset.pattern.permute.xlu0 1
        %400 = vperm.xlu0 %399, %v365
        %v401 = vpop.permute.xlu0 %400
        %402 = vset.pattern.permute.xlu0 1
        %403 = vperm.xlu0 %402, %v366
        %v404 = vpop.permute.xlu0 %403
        %405 = vset.pattern.permute.xlu0 1
        %406 = vperm.xlu0 %405, %v367
        %v407 = vpop.permute.xlu0 %406
        %408 = vset.pattern.permute.xlu0 1
        %409 = vperm.xlu0 %408, %v368
        %v410 = vpop.permute.xlu0 %409
        %411 = vset.pattern.permute.xlu0 1
        %412 = vperm.xlu0 %411, %v369
        %v413 = vpop.permute.xlu0 %412
        %414 = vset.pattern.permute.xlu0 1
        %415 = vperm.xlu0 %414, %v370
        %v416 = vpop.permute.xlu0 %415
        %417 = vset.pattern.permute.xlu0 1
        %418 = vperm.xlu0 %417, %v371
        %v419 = vpop.permute.xlu0 %418
        %vm420 = vcmp.eq.s32.totalorder %v243, %v374
        %vm421 = vcmp.eq.s32.totalorder %v243, %v377
        %vm422 = vcmp.eq.s32.totalorder %v243, %v380
        %vm423 = vcmp.eq.s32.totalorder %v243, %v383
        %vm424 = vcmp.eq.s32.totalorder %v243, %v386
        %vm425 = vcmp.eq.s32.totalorder %v243, %v389
        %vm426 = vcmp.eq.s32.totalorder %v243, %v392
        %vm427 = vcmp.eq.s32.totalorder %v243, %v395
        %vm428 = vcmp.eq.s32.totalorder %v243, %v398
        %vm429 = vcmp.eq.s32.totalorder %v243, %v401
        %vm430 = vcmp.eq.s32.totalorder %v243, %v404
        %vm431 = vcmp.eq.s32.totalorder %v243, %v407
        %vm432 = vcmp.eq.s32.totalorder %v243, %v410
        %vm433 = vcmp.eq.s32.totalorder %v243, %v413
        %vm434 = vcmp.eq.s32.totalorder %v243, %v416
        %vm435 = vcmp.eq.s32.totalorder %v243, %v419
        %v436 = vsel %vm420, 1, 0
        %v437 = vsel %vm421, 1, 0
        %v438 = vsel %vm422, 1, 0
        %v439 = vsel %vm423, 1, 0
        %v440 = vsel %vm424, 1, 0
        %v441 = vsel %vm425, 1, 0
        %v442 = vsel %vm426, 1, 0
        %v443 = vsel %vm427, 1, 0
        %v444 = vsel %vm428, 1, 0
        %v445 = vsel %vm429, 1, 0
        %v446 = vsel %vm430, 1, 0
        %v447 = vsel %vm431, 1, 0
        %v448 = vsel %vm432, 1, 0
        %v449 = vsel %vm433, 1, 0
        %v450 = vsel %vm434, 1, 0
        %v451 = vsel %vm435, 1, 0
        %v452 = vcvt.s32.f32 %v436
        %v453 = vcvt.s32.f32 %v437
        %v454 = vcvt.s32.f32 %v438
        %v455 = vcvt.s32.f32 %v439
        %v456 = vcvt.s32.f32 %v440
        %v457 = vcvt.s32.f32 %v441
        %v458 = vcvt.s32.f32 %v442
        %v459 = vcvt.s32.f32 %v443
        %v460 = vcvt.s32.f32 %v444
        %v461 = vcvt.s32.f32 %v445
        %v462 = vcvt.s32.f32 %v446
        %v463 = vcvt.s32.f32 %v447
        %v464 = vcvt.s32.f32 %v448
        %v465 = vcvt.s32.f32 %v449
        %v466 = vcvt.s32.f32 %v450
        %v467 = vcvt.s32.f32 %v451
        %v468 = vadd.f32 %v340, %v452
        %v469 = vadd.f32 %v341, %v453
        %v470 = vadd.f32 %v342, %v454
        %v471 = vadd.f32 %v343, %v455
        %v472 = vadd.f32 %v344, %v456
        %v473 = vadd.f32 %v345, %v457
        %v474 = vadd.f32 %v346, %v458
        %v475 = vadd.f32 %v347, %v459
        %v476 = vadd.f32 %v348, %v460
        %v477 = vadd.f32 %v349, %v461
        %v478 = vadd.f32 %v350, %v462
        %v479 = vadd.f32 %v351, %v463
        %v480 = vadd.f32 %v352, %v464
        %v481 = vadd.f32 %v353, %v465
        %v482 = vadd.f32 %v354, %v466
        %v483 = vadd.f32 %v355, %v467
        %v484 = vld [vmem:[%s1] sm:$0xff]
        %v485 = vld [vmem:[%s1 + $0x8] sm:$0xff]
        %v486 = vld [vmem:[%s1 + $0x10] sm:$0xff]
        %v487 = vld [vmem:[%s1 + $0x18] sm:$0xff]
        %v488 = vld [vmem:[%s1 + $0x20] sm:$0xff]
        %v489 = vld [vmem:[%s1 + $0x28] sm:$0xff]
        %v490 = vld [vmem:[%s1 + $0x30] sm:$0xff]
        %v491 = vld [vmem:[%s1 + $0x38] sm:$0xff]
        %v492 = vld [vmem:[%s2] sm:$0x1]
        %v494 = vperm.slane %v492, 0
        %vm496 = vcmask 523264
        %v498 = vsel %vm496, %v468, 0
        %v501 = vsel %vm496, %v469, 0
        %v504 = vsel %vm496, %v470, 0
        %v507 = vsel %vm496, %v471, 0
        %v510 = vsel %vm496, %v472, 0
        %v513 = vsel %vm496, %v473, 0
        %v516 = vsel %vm496, %v474, 0
        %v519 = vsel %vm496, %v475, 0
        %v522 = vsel %vm496, %v476, 0
        %v525 = vsel %vm496, %v477, 0
        %v528 = vsel %vm496, %v478, 0
        %v531 = vsel %vm496, %v479, 0
        %v534 = vsel %vm496, %v480, 0
        %v537 = vsel %vm496, %v481, 0
        %v540 = vsel %vm496, %v482, 0
        %v543 = vsel %vm496, %v483, 0
        %545 = vmatpush.msra.mxu0 0.0
        %546 = vmatpush.msra.mxu0 0.0
        %547 = vmatpush.msra.mxu0 0.0
        %548 = vmatpush.msra.mxu0 0.0
        %549 = vmatpush.msra.mxu0 0.0
        %550 = vmatpush.msra.mxu0 0.0
        %551 = vmatpush.msra.mxu0 0.0
        %552 = vmatpush.msra.mxu0 0.0
        %553 = vmatpush.msra.mxu0 %v491
        %554 = vmatpush.msra.mxu0 %v490
        %555 = vmatpush.msra.mxu0 %v489
        %556 = vmatpush.msra.mxu0 %v488
        %557 = vmatpush.msra.mxu0 %v487
        %558 = vmatpush.msra.mxu0 %v486
        %559 = vmatpush.msra.mxu0 %v485
        %560 = vmatpush.msra.mxu0 %v484
        %561 = vmatmul.f32.gmra.mxu0 %v498
        %v562 = vpop.f32.mrf.mxu0
        %v563 = vadd.f32 %v494, %v562
        %564 = vmatmul.f32.gmra.mxu0 %v501
        %v565 = vpop.f32.mrf.mxu0
        %v566 = vadd.f32 %v494, %v565
        %567 = vmatmul.f32.gmra.mxu0 %v504
        %v568 = vpop.f32.mrf.mxu0
        %v569 = vadd.f32 %v494, %v568
        %570 = vmatmul.f32.gmra.mxu0 %v507
        %v571 = vpop.f32.mrf.mxu0
        %v572 = vadd.f32 %v494, %v571
        %573 = vmatmul.f32.gmra.mxu0 %v510
        %v574 = vpop.f32.mrf.mxu0
        %v575 = vadd.f32 %v494, %v574
        %576 = vmatmul.f32.gmra.mxu0 %v513
        %v577 = vpop.f32.mrf.mxu0
        %v578 = vadd.f32 %v494, %v577
        %579 = vmatmul.f32.gmra.mxu0 %v516
        %v580 = vpop.f32.mrf.mxu0
        %v581 = vadd.f32 %v494, %v580
        %582 = vmatmul.f32.gmra.mxu0 %v519
        %v583 = vpop.f32.mrf.mxu0
        %v584 = vadd.f32 %v494, %v583
        %585 = vmatmul.f32.gmra.mxu0 %v522
        %v586 = vpop.f32.mrf.mxu0
        %v587 = vadd.f32 %v494, %v586
        %588 = vmatmul.f32.gmra.mxu0 %v525
        %v589 = vpop.f32.mrf.mxu0
        %v590 = vadd.f32 %v494, %v589
        %591 = vmatmul.f32.gmra.mxu0 %v528
        %v592 = vpop.f32.mrf.mxu0
        %v593 = vadd.f32 %v494, %v592
        %594 = vmatmul.f32.gmra.mxu0 %v531
        %v595 = vpop.f32.mrf.mxu0
        %v596 = vadd.f32 %v494, %v595
        %597 = vmatmul.f32.gmra.mxu0 %v534
        %v598 = vpop.f32.mrf.mxu0
        %v599 = vadd.f32 %v494, %v598
        %600 = vmatmul.f32.gmra.mxu0 %v537
        %v601 = vpop.f32.mrf.mxu0
        %v602 = vadd.f32 %v494, %v601
        %603 = vmatmul.f32.gmra.mxu0 %v540
        %v604 = vpop.f32.mrf.mxu0
        %v605 = vadd.f32 %v494, %v604
        %606 = vmatmul.f32.gmra.mxu0 %v543
        %v607 = vpop.f32.mrf.mxu0
        %v608 = vadd.f32 %v494, %v607
        %609 = vdwg.mxu0
        %v610 = vmax.f32 %v563, 0.0
        %v611 = vmax.f32 %v566, 0.0
        %v612 = vmax.f32 %v569, 0.0
        %v613 = vmax.f32 %v572, 0.0
        %v614 = vmax.f32 %v575, 0.0
        %v615 = vmax.f32 %v578, 0.0
        %v616 = vmax.f32 %v581, 0.0
        %v617 = vmax.f32 %v584, 0.0
        %v618 = vmax.f32 %v587, 0.0
        %v619 = vmax.f32 %v590, 0.0
        %v620 = vmax.f32 %v593, 0.0
        %v621 = vmax.f32 %v596, 0.0
        %v622 = vmax.f32 %v599, 0.0
        %v623 = vmax.f32 %v602, 0.0
        %v624 = vmax.f32 %v605, 0.0
        %v625 = vmax.f32 %v608, 0.0
        %v626 = vld [vmem:[%s3] sm:$0xff]
        %v627 = vld [vmem:[%s3 + $0x8] sm:$0xff]
        %v628 = vld [vmem:[%s3 + $0x10] sm:$0xff]
        %v629 = vld [vmem:[%s3 + $0x18] sm:$0xff]
        %v630 = vld [vmem:[%s3 + $0x20] sm:$0xff]
        %v631 = vld [vmem:[%s3 + $0x28] sm:$0xff]
        %v632 = vld [vmem:[%s3 + $0x30] sm:$0xff]
        %v633 = vld [vmem:[%s3 + $0x38] sm:$0xff]
        %v634 = vld [vmem:[%s3 + $0x40] sm:$0xff]
        %v635 = vld [vmem:[%s3 + $0x48] sm:$0xff]
        %v636 = vld [vmem:[%s3 + $0x50] sm:$0xff]
        %v637 = vld [vmem:[%s3 + $0x58] sm:$0xff]
        %v638 = vld [vmem:[%s3 + $0x60] sm:$0xff]
        %v639 = vld [vmem:[%s3 + $0x68] sm:$0xff]
        %v640 = vld [vmem:[%s3 + $0x70] sm:$0xff]
        %v641 = vld [vmem:[%s3 + $0x78] sm:$0xff]
        %v642 = vld [vmem:[%s4] sm:$0x1]
        %v644 = vperm.slane %v642, 0
        %646 = vmatpush.msra.mxu0 %v641
        %647 = vmatpush.msra.mxu0 %v640
        %648 = vmatpush.msra.mxu0 %v639
        %649 = vmatpush.msra.mxu0 %v638
        %650 = vmatpush.msra.mxu0 %v637
        %651 = vmatpush.msra.mxu0 %v636
        %652 = vmatpush.msra.mxu0 %v635
        %653 = vmatpush.msra.mxu0 %v634
        %654 = vmatpush.msra.mxu0 %v633
        %655 = vmatpush.msra.mxu0 %v632
        %656 = vmatpush.msra.mxu0 %v631
        %657 = vmatpush.msra.mxu0 %v630
        %658 = vmatpush.msra.mxu0 %v629
        %659 = vmatpush.msra.mxu0 %v628
        %660 = vmatpush.msra.mxu0 %v627
        %661 = vmatpush.msra.mxu0 %v626
        %662 = vmatmul.f32.gmra.mxu0 %v610
        %v663 = vpop.f32.mrf.mxu0
        %v664 = vadd.f32 %v644, %v663
        %665 = vmatmul.f32.gmra.mxu0 %v611
        %v666 = vpop.f32.mrf.mxu0
        %v667 = vadd.f32 %v644, %v666
        %668 = vmatmul.f32.gmra.mxu0 %v612
        %v669 = vpop.f32.mrf.mxu0
        %v670 = vadd.f32 %v644, %v669
        %671 = vmatmul.f32.gmra.mxu0 %v613
        %v672 = vpop.f32.mrf.mxu0
        %v673 = vadd.f32 %v644, %v672
        %674 = vmatmul.f32.gmra.mxu0 %v614
        %v675 = vpop.f32.mrf.mxu0
        %v676 = vadd.f32 %v644, %v675
        %677 = vmatmul.f32.gmra.mxu0 %v615
        %v678 = vpop.f32.mrf.mxu0
        %v679 = vadd.f32 %v644, %v678
        %680 = vmatmul.f32.gmra.mxu0 %v616
        %v681 = vpop.f32.mrf.mxu0
        %v682 = vadd.f32 %v644, %v681
        %683 = vmatmul.f32.gmra.mxu0 %v617
        %v684 = vpop.f32.mrf.mxu0
        %v685 = vadd.f32 %v644, %v684
        %686 = vmatmul.f32.gmra.mxu0 %v618
        %v687 = vpop.f32.mrf.mxu0
        %v688 = vadd.f32 %v644, %v687
        %689 = vmatmul.f32.gmra.mxu0 %v619
        %v690 = vpop.f32.mrf.mxu0
        %v691 = vadd.f32 %v644, %v690
        %692 = vmatmul.f32.gmra.mxu0 %v620
        %v693 = vpop.f32.mrf.mxu0
        %v694 = vadd.f32 %v644, %v693
        %695 = vmatmul.f32.gmra.mxu0 %v621
        %v696 = vpop.f32.mrf.mxu0
        %v697 = vadd.f32 %v644, %v696
        %698 = vmatmul.f32.gmra.mxu0 %v622
        %v699 = vpop.f32.mrf.mxu0
        %v700 = vadd.f32 %v644, %v699
        %701 = vmatmul.f32.gmra.mxu0 %v623
        %v702 = vpop.f32.mrf.mxu0
        %v703 = vadd.f32 %v644, %v702
        %704 = vmatmul.f32.gmra.mxu0 %v624
        %v705 = vpop.f32.mrf.mxu0
        %v706 = vadd.f32 %v644, %v705
        %707 = vmatmul.f32.gmra.mxu0 %v625
        %v708 = vpop.f32.mrf.mxu0
        %v709 = vadd.f32 %v644, %v708
        %710 = vdwg.mxu0
        %711 = vmax.xlane.f32.xlu0 %v664
        %v712 = vpop.xlane.xlu0 %711
        %713 = vmax.xlane.f32.xlu0 %v667
        %v714 = vpop.xlane.xlu0 %713
        %715 = vmax.xlane.f32.xlu0 %v670
        %v716 = vpop.xlane.xlu0 %715
        %717 = vmax.xlane.f32.xlu0 %v673
        %v718 = vpop.xlane.xlu0 %717
        %719 = vmax.xlane.f32.xlu0 %v676
        %v720 = vpop.xlane.xlu0 %719
        %721 = vmax.xlane.f32.xlu0 %v679
        %v722 = vpop.xlane.xlu0 %721
        %723 = vmax.xlane.f32.xlu0 %v682
        %v724 = vpop.xlane.xlu0 %723
        %725 = vmax.xlane.f32.xlu0 %v685
        %v726 = vpop.xlane.xlu0 %725
        %727 = vmax.xlane.f32.xlu0 %v688
        %v728 = vpop.xlane.xlu0 %727
        %729 = vmax.xlane.f32.xlu0 %v691
        %v730 = vpop.xlane.xlu0 %729
        %731 = vmax.xlane.f32.xlu0 %v694
        %v732 = vpop.xlane.xlu0 %731
        %733 = vmax.xlane.f32.xlu0 %v697
        %v734 = vpop.xlane.xlu0 %733
        %735 = vmax.xlane.f32.xlu0 %v700
        %v736 = vpop.xlane.xlu0 %735
        %737 = vmax.xlane.f32.xlu0 %v703
        %v738 = vpop.xlane.xlu0 %737
        %739 = vmax.xlane.f32.xlu0 %v706
        %v740 = vpop.xlane.xlu0 %739
        %741 = vmax.xlane.f32.xlu0 %v709
        %v742 = vpop.xlane.xlu0 %741
        %v743 = vsub.f32 %v664, %v712
        %v744 = vsub.f32 %v667, %v714
        %v745 = vsub.f32 %v670, %v716
        %v746 = vsub.f32 %v673, %v718
        %v747 = vsub.f32 %v676, %v720
        %v748 = vsub.f32 %v679, %v722
        %v749 = vsub.f32 %v682, %v724
        %v750 = vsub.f32 %v685, %v726
        %v751 = vsub.f32 %v688, %v728
        %v752 = vsub.f32 %v691, %v730
        %v753 = vsub.f32 %v694, %v732
        %v754 = vsub.f32 %v697, %v734
        %v755 = vsub.f32 %v700, %v736
        %v756 = vsub.f32 %v703, %v738
        %v757 = vsub.f32 %v706, %v740
        %v758 = vsub.f32 %v709, %v742
        %v759 = vmul.f32 %v743, 1.442695
        %v760 = vpow.pop %v759
        %v761 = vmul.f32 %v744, 1.442695
        %v762 = vpow.pop %v761
        %v763 = vmul.f32 %v745, 1.442695
        %v764 = vpow.pop %v763
        %v765 = vmul.f32 %v746, 1.442695
        %v766 = vpow.pop %v765
        %v767 = vmul.f32 %v747, 1.442695
        %v768 = vpow.pop %v767
        %v769 = vmul.f32 %v748, 1.442695
        %v770 = vpow.pop %v769
        %v771 = vmul.f32 %v749, 1.442695
        %v772 = vpow.pop %v771
        %v773 = vmul.f32 %v750, 1.442695
        %v774 = vpow.pop %v773
        %v775 = vmul.f32 %v751, 1.442695
        %v776 = vpow.pop %v775
        %v777 = vmul.f32 %v752, 1.442695
        %v778 = vpow.pop %v777
        %v779 = vmul.f32 %v753, 1.442695
        %v780 = vpow.pop %v779
        %v781 = vmul.f32 %v754, 1.442695
        %v782 = vpow.pop %v781
        %v783 = vmul.f32 %v755, 1.442695
        %v784 = vpow.pop %v783
        %v785 = vmul.f32 %v756, 1.442695
        %v786 = vpow.pop %v785
        %v787 = vmul.f32 %v757, 1.442695
        %v788 = vpow.pop %v787
        %v789 = vmul.f32 %v758, 1.442695
        %v790 = vpow.pop %v789
        %791 = vadd.xlane.f32.xlu0 %v760
        %v792 = vpop.xlane.xlu0 %791
        %793 = vadd.xlane.f32.xlu0 %v762
        %v794 = vpop.xlane.xlu0 %793
        %795 = vadd.xlane.f32.xlu0 %v764
        %v796 = vpop.xlane.xlu0 %795
        %797 = vadd.xlane.f32.xlu0 %v766
        %v798 = vpop.xlane.xlu0 %797
        %799 = vadd.xlane.f32.xlu0 %v768
        %v800 = vpop.xlane.xlu0 %799
        %801 = vadd.xlane.f32.xlu0 %v770
        %v802 = vpop.xlane.xlu0 %801
        %803 = vadd.xlane.f32.xlu0 %v772
        %v804 = vpop.xlane.xlu0 %803
        %805 = vadd.xlane.f32.xlu0 %v774
        %v806 = vpop.xlane.xlu0 %805
        %807 = vadd.xlane.f32.xlu0 %v776
        %v808 = vpop.xlane.xlu0 %807
        %809 = vadd.xlane.f32.xlu0 %v778
        %v810 = vpop.xlane.xlu0 %809
        %811 = vadd.xlane.f32.xlu0 %v780
        %v812 = vpop.xlane.xlu0 %811
        %813 = vadd.xlane.f32.xlu0 %v782
        %v814 = vpop.xlane.xlu0 %813
        %815 = vadd.xlane.f32.xlu0 %v784
        %v816 = vpop.xlane.xlu0 %815
        %817 = vadd.xlane.f32.xlu0 %v786
        %v818 = vpop.xlane.xlu0 %817
        %819 = vadd.xlane.f32.xlu0 %v788
        %v820 = vpop.xlane.xlu0 %819
        %821 = vadd.xlane.f32.xlu0 %v790
        %v822 = vpop.xlane.xlu0 %821
        %v823 = vlog2.pop %v792
        %v824 = vmul.f32 %v823, 0.6931472
        %v825 = vlog2.pop %v794
        %v826 = vmul.f32 %v825, 0.6931472
        %v827 = vlog2.pop %v796
        %v828 = vmul.f32 %v827, 0.6931472
        %v829 = vlog2.pop %v798
        %v830 = vmul.f32 %v829, 0.6931472
        %v831 = vlog2.pop %v800
        %v832 = vmul.f32 %v831, 0.6931472
        %v833 = vlog2.pop %v802
        %v834 = vmul.f32 %v833, 0.6931472
        %v835 = vlog2.pop %v804
        %v836 = vmul.f32 %v835, 0.6931472
        %v837 = vlog2.pop %v806
        %v838 = vmul.f32 %v837, 0.6931472
        %v839 = vlog2.pop %v808
        %v840 = vmul.f32 %v839, 0.6931472
        %v841 = vlog2.pop %v810
        %v842 = vmul.f32 %v841, 0.6931472
        %v843 = vlog2.pop %v812
        %v844 = vmul.f32 %v843, 0.6931472
        %v845 = vlog2.pop %v814
        %v846 = vmul.f32 %v845, 0.6931472
        %v847 = vlog2.pop %v816
        %v848 = vmul.f32 %v847, 0.6931472
        %v849 = vlog2.pop %v818
        %v850 = vmul.f32 %v849, 0.6931472
        %v851 = vlog2.pop %v820
        %v852 = vmul.f32 %v851, 0.6931472
        %v853 = vlog2.pop %v822
        %v854 = vmul.f32 %v853, 0.6931472
        %v855 = vadd.f32 %v824, %v712
        %v856 = vadd.f32 %v826, %v714
        %v857 = vadd.f32 %v828, %v716
        %v858 = vadd.f32 %v830, %v718
        %v859 = vadd.f32 %v832, %v720
        %v860 = vadd.f32 %v834, %v722
        %v861 = vadd.f32 %v836, %v724
        %v862 = vadd.f32 %v838, %v726
        %v863 = vadd.f32 %v840, %v728
        %v864 = vadd.f32 %v842, %v730
        %v865 = vadd.f32 %v844, %v732
        %v866 = vadd.f32 %v846, %v734
        %v867 = vadd.f32 %v848, %v736
        %v868 = vadd.f32 %v850, %v738
        %v869 = vadd.f32 %v852, %v740
        %v870 = vadd.f32 %v854, %v742
        %v871 = vsub.f32 %v664, %v855
        %v872 = vsub.f32 %v667, %v856
        %v873 = vsub.f32 %v670, %v857
        %v874 = vsub.f32 %v673, %v858
        %v875 = vsub.f32 %v676, %v859
        %v876 = vsub.f32 %v679, %v860
        %v877 = vsub.f32 %v682, %v861
        %v878 = vsub.f32 %v685, %v862
        %v879 = vsub.f32 %v688, %v863
        %v880 = vsub.f32 %v691, %v864
        %v881 = vsub.f32 %v694, %v865
        %v882 = vsub.f32 %v697, %v866
        %v883 = vsub.f32 %v700, %v867
        %v884 = vsub.f32 %v703, %v868
        %v885 = vsub.f32 %v706, %v869
        %v886 = vsub.f32 %v709, %v870
        %887 = vst [vmem:[%s218] sm:$0xff] %v871
        %888 = vst [vmem:[%s218 + $0x8] sm:$0xff] %v872
        %889 = vst [vmem:[%s218 + $0x10] sm:$0xff] %v873
        %890 = vst [vmem:[%s218 + $0x18] sm:$0xff] %v874
        %891 = vst [vmem:[%s218 + $0x20] sm:$0xff] %v875
        %892 = vst [vmem:[%s218 + $0x28] sm:$0xff] %v876
        %893 = vst [vmem:[%s218 + $0x30] sm:$0xff] %v877
        %894 = vst [vmem:[%s218 + $0x38] sm:$0xff] %v878
        %895 = vst [vmem:[%s218 + $0x40] sm:$0xff] %v879
        %896 = vst [vmem:[%s218 + $0x48] sm:$0xff] %v880
        %897 = vst [vmem:[%s218 + $0x50] sm:$0xff] %v881
        %898 = vst [vmem:[%s218 + $0x58] sm:$0xff] %v882
        %899 = vst [vmem:[%s218 + $0x60] sm:$0xff] %v883
        %900 = vst [vmem:[%s218 + $0x68] sm:$0xff] %v884
        %901 = vst [vmem:[%s218 + $0x70] sm:$0xff] %v885
        %902 = vst [vmem:[%s218 + $0x78] sm:$0xff] %v886
        %s903 = sand.u32 %s137, 1
        %s904 = scalar_lea.sflag [#allocation3], %s903
        %s905 = sand.u32 %s137, 1
        %s906 = smul.addr %s905, 128
        %s907 = scalar_lea.vmem [#allocation2], %s906
        // Predicated region
        $region41: #{tpu_custom_call.1} parent=39 // pred_check
          %p908 = pneg %p147
        $region42: #{tpu_custom_call.1} parent=39 // pred_check_branch
          %910 = sbr.rel (%p908) target = $region44
        $region43: #{tpu_custom_call.1} parent=39 // pred_region
          %s911 = smul.u32 16, %s19
          %913 = vsyncadd %s904, 0
          %s914 = smul.addr %s911, 8
          %s915 = scalar_lea.hbm %s5, %s914
          %s916 = sshll.u32 %s907, 4
          %s917 = int_to_ptr.vmem [resolvable:$true] %s916
          %s918 = sshll.u32 %s915, 4
          %s919 = int_to_ptr.hbm [resolvable:$true] %s918
          %924 = dma.vmem_to_hbm [thread:$0]  %s917, 2048, %s919, %s904, 128, 128, 8
        $region44: #{tpu_custom_call.1} parent=39 // pred_fallthru
          _
      $region40: #{tpu_custom_call.1} parent=5 // pred_fallthru
        _
      %p925 = scmp.le.s32.totalorder 2, %s14
      // Predicated region
      $region45: #{tpu_custom_call.1} parent=5 // pred_check
        %p926 = pneg %p925
      $region46: #{tpu_custom_call.1} parent=5 // pred_check_branch
        %928 = sbr.rel (%p926) target = $region48
      $region47: #{tpu_custom_call.1} parent=5 // pred_region
        %s929 = ssub.s32 %s14, 2
        // Predicated region
        $region49: #{tpu_custom_call.1} parent=47 // pred_check
          %p930 = pneg %p153
        $region50: #{tpu_custom_call.1} parent=47 // pred_check_branch
          %932 = sbr.rel (%p930) target = $region52
        $region51: #{tpu_custom_call.1} parent=47 // pred_region
          %s933 = sand.u32 %s138, 1
          %s934 = scalar_lea.sflag [#allocation3], %s933
          %s935 = sand.u32 %s138, 1
          %s936 = smul.addr %s935, 128
          %s937 = scalar_lea.vmem [#allocation2], %s936
          %939 = dma.done %s934, 2048
        $region52: #{tpu_custom_call.1} parent=47 // pred_fallthru
          _
      $region48: #{tpu_custom_call.1} parent=5 // pred_fallthru
        _
    $region6: #{tpu_custom_call.1} parent=1 // loop_footer
      %s18 = sadd.s32 1, %s14
    $region7: #{tpu_custom_call.1} parent=1 // loop_footer_branch
      %13 = sbr.rel target = $region3
    $region8: #{tpu_custom_call.1} parent=1 // loop_exit
      _
    %940 = vsyncpa [#allocation3], 1
    %s941 = scalar_lea.sflag [#allocation3], 1
    %942 = vsyncpa %s941, 1

</llo_original>
